<compile_context>
chip_gen: v5e
topology: v5e:2x2
jax: 0.10.0
libtpu: 0.0.40
codegen_flags: <defaults>
</compile_context>

<pallas_src>
import functools

import numpy as np
import jax
import jax.numpy as jnp
from jax.experimental import pallas as pl
from jax.experimental.pallas import tpu as pltpu


def _round_up(x, m):
    return ((x + m - 1) // m) * m


# ---------------------------------------------------------------------------
# Fused decoder kernel
# ---------------------------------------------------------------------------
def _convt_layer(slab_ref, w_ref, b_ref, posb, *, BS, K, lo=None, hi=None, relu):
    """One stride-1 ConvTranspose1d as K accumulating 2-D MXU matmuls.

    slab_ref : (R, CP)     zero-padded channels-last activations; batches are
                           stacked along rows with per-batch stride S
                           (R >= BS + K - 1).
    w_ref    : (K, CP, CP) length-flipped, channel-padded weights.
    b_ref    : (1, CP)     channel-padded bias.
    posb     : (BS, CP)    int32 row position within its batch (r mod S).
    Returns  : (BS, CP) f32.  If lo/hi are given, rows whose in-batch position
               is outside [lo, hi) are zeroed -- this materialises the zero
               halo the next layer needs without extra stores.
    """
    acc = jnp.dot(slab_ref[0:BS, :], w_ref[0],
                  preferred_element_type=jnp.float32)
    for k in range(1, K):                       # K accumulating matmuls
        acc = acc + jnp.dot(slab_ref[k:k + BS, :], w_ref[k],
                            preferred_element_type=jnp.float32)
    y = acc + b_ref[...]                        # bias broadcast (1, CP)
    if relu:
        y = jnp.maximum(y, 0.0)
    if lo is not None:
        keep = jnp.logical_and(posb >= lo, posb < hi)
        y = jnp.where(keep, y, 0.0)             # zero halos / inter-batch rows
    return y


def decoder_kernel(x_ref, pos_ref, w1_ref, b1_ref, w2_ref, b2_ref,
                   w3_ref, b3_ref, o_ref, s1, s2, *, K, BS, a1, L1, a2, L2):
    """Fused Decoder forward: (ConvT1d+ReLU) x2 -> ConvT1d, all in VMEM.

    x_ref : (R, CP)  input slab (batches stacked on rows, zero halos, padded
                     channels) -- built once in the wrapper.
    o_ref : (BS, CP) lane-dense output slab (valid rows sliced in the wrapper).
    s1/s2 : (R, CP)  VMEM activation slabs feeding layers 2/3.
    """
    R, CP = s1.shape

    # The trailing read-halo rows of the scratch slabs are never written by the
    # full [0:BS) stores below; zero them once (<= 8 aligned rows each).
    if R > BS:
        tail = jnp.zeros((R - BS, CP), jnp.float32)
        s1[BS:, :] = tail
        s2[BS:, :] = tail

    # In-batch row index, broadcast once across lanes (hoisted out of layers).
    posb = jnp.broadcast_to(pos_ref[...], (BS, CP))

    # decnn_block1: ConvTranspose1d + ReLU  -> one aligned lane-dense store.
    y1 = _convt_layer(x_ref, w1_ref, b1_ref, posb,
                      BS=BS, K=K, lo=a1, hi=a1 + L1, relu=True)
    s1[0:BS, :] = y1

    # decnn_block2: ConvTranspose1d + ReLU
    y2 = _convt_layer(s1, w2_ref, b2_ref, posb,
                      BS=BS, K=K, lo=a2, hi=a2 + L2, relu=True)
    s2[0:BS, :] = y2

    # decnn_block3: ConvTranspose1d (no ReLU); invalid rows are sliced off in
    # the wrapper, so no mask is needed here.
    y3 = _convt_layer(s2, w3_ref, b3_ref, posb, BS=BS, K=K, relu=False)
    o_ref[...] = y3


# ---------------------------------------------------------------------------
# Wrapper
# ---------------------------------------------------------------------------
def decoder_forward(x, kparams, *, in_channels, out_channels, kernel_size):
    """Matches Decoder.forward.  x: (B, C3*L0) flattened latent.  Returns NCL."""
    B = x.shape[0]
    K = kernel_size
    p = K // 2
    pad = K - 1 - p            # zero-pad turning ConvT into a correlation

    C3 = out_channels[2]
    C0 = in_channels
    CP = kparams["w1"].shape[1]          # lane-padded channel width (128*n)

    x_ncl = x.reshape(B, C3, -1)                      # x.view(B, oc[-1], -1)
    L0 = x_ncl.shape[2]
    L1 = L0 + K - 1 - 2 * p
    L2 = L1 + K - 1 - 2 * p
    L3 = L2 + K - 1 - 2 * p

    # Slab geometry: batches stacked on rows with stride S; interior of the
    # input starts at a sublane-aligned offset A; each layer's valid output
    # shifts up by `pad` rows (A >= 3*pad keeps every halo in range).
    A = 0 if pad == 0 else _round_up(3 * pad, 8)
    S = _round_up(A + L0 + pad, 8)
    BS = B * S
    R = BS + (0 if K <= 1 else _round_up(K - 1, 8))
    a1, a2, a3 = A - pad, A - 2 * pad, A - 3 * pad

    # Cheap boundary layout ops (fused by XLA): NCL -> channels-last, zero-pad
    # channels to CP (lane-dense) and rows to the halo'd slab, stack batches.
    x_blc = jnp.transpose(x_ncl, (0, 2, 1))                        # (B, L0, C3)
    x_slab = jnp.pad(x_blc, ((0, 0), (A, S - A - L0), (0, CP - C3)))
    x_slab = x_slab.reshape(BS, CP)
    x_slab = jnp.pad(x_slab, ((0, R - BS), (0, 0)))                # (R, CP)

    # In-batch row position (r mod S) -- compile-time constant table.
    pos = jnp.asarray(np.tile(np.arange(S, dtype=np.int32), B).reshape(BS, 1))

    flops = 2 * 3 * K * BS * CP * CP
    bytes_accessed = 4 * (x_slab.size + pos.size + BS * CP
                          + sum(int(np.prod(v.shape)) for v in kparams.values()))

    o_full = pl.pallas_call(
        functools.partial(decoder_kernel, K=K, BS=BS,
                          a1=a1, L1=L1, a2=a2, L2=L2),
        out_shape=jax.ShapeDtypeStruct((BS, CP), jnp.float32),
        in_specs=[pl.BlockSpec(memory_space=pltpu.MemorySpace.VMEM)] * 8,
        out_specs=pl.BlockSpec(memory_space=pltpu.MemorySpace.VMEM),
        scratch_shapes=[pltpu.VMEM((R, CP), jnp.float32),
                        pltpu.VMEM((R, CP), jnp.float32)],
        cost_estimate=pl.CostEstimate(flops=flops, transcendentals=0,
                                      bytes_accessed=bytes_accessed),
    )(x_slab, pos, kparams["w1"], kparams["b1"],
      kparams["w2"], kparams["b2"], kparams["w3"], kparams["b3"])

    # Slice the valid rows / real channels and return PyTorch (B, C0, L3).
    y = o_full.reshape(B, S, CP)[:, a3:a3 + L3, :C0]
    return jnp.transpose(y, (0, 2, 1))


# ---------------------------------------------------------------------------
# Parameters
# ---------------------------------------------------------------------------
def init_decoder_params(key, in_channels, out_channels, kernel_size):
    """Deterministic synthetic parameters (PyTorch ConvTranspose1d layout)."""
    ks = jax.random.split(key, 6)

    def w(k, cin, cout):
        bound = 1.0 / np.sqrt(cin * kernel_size)
        return jax.random.uniform(k, (cin, cout, kernel_size),
                                  jnp.float32, -bound, bound)

    def bb(k, cin, cout):
        bound = 1.0 / np.sqrt(cin * kernel_size)
        return jax.random.uniform(k, (cout,), jnp.float32, -bound, bound)

    return {
        "w1": w(ks[0], out_channels[2], out_channels[1]),
        "b1": bb(ks[1], out_channels[2], out_channels[1]),
        "w2": w(ks[2], out_channels[1], out_channels[0]),
        "b2": bb(ks[3], out_channels[1], out_channels[0]),
        "w3": w(ks[4], out_channels[0], in_channels),
        "b3": bb(ks[5], out_channels[0], in_channels),
    }


def prepare_decoder_params(params, *, lane=128):
    """One-time conversion of PyTorch weights into kernel-ready layout.

    ConvTranspose1d weight (Cin, Cout, K) -> (K, CP, CP): slice k holds the
    length-flipped kernel W[:, :, K-1-k], zero-padded so both channel dims are
    lane-dense (CP = 128*n).  Bias -> (1, CP).
    """
    max_c = max(max(params[k].shape[0], params[k].shape[1])
                for k in ("w1", "w2", "w3"))
    CP = _round_up(max_c, lane)

    def prep_w(W):
        cin, cout, _ = W.shape
        wc = jnp.transpose(jnp.flip(W, axis=2), (2, 0, 1))      # (K, Cin, Cout)
        return jnp.zeros((wc.shape[0], CP, CP), jnp.float32
                         ).at[:, :cin, :cout].set(wc)

    def prep_b(b):
        return jnp.zeros((1, CP), jnp.float32).at[:, :b.shape[0]].set(b)

    return {"w1": prep_w(params["w1"]), "b1": prep_b(params["b1"]),
            "w2": prep_w(params["w2"]), "b2": prep_b(params["b2"]),
            "w3": prep_w(params["w3"]), "b3": prep_b(params["b3"])}


# ---------------------------------------------------------------------------
# Pure numpy reference (PyTorch ConvTranspose1d semantics) for verification.
# ---------------------------------------------------------------------------
def ref_convt1d(x, W, b, relu):
    x = np.asarray(x); W = np.asarray(W); b = np.asarray(b)
    B, Cin, L = x.shape
    _, Cout, K = W.shape
    p = K // 2
    L_out = L + K - 1 - 2 * p
    y = np.zeros((B, Cout, L_out), np.float32)
    for t in range(L_out):
        for k in range(K):
            i = t + p - k
            if 0 <= i < L:
                y[:, :, t] += x[:, :, i] @ W[:, :, k]
    y = y + b[None, :, None]
    if relu:
        y = np.maximum(y, 0.0)
    return y


def ref_decoder(x, params, out_channels):
    x = np.asarray(x).reshape(x.shape[0], out_channels[2], -1)
    x = ref_convt1d(x, params["w1"], params["b1"], relu=True)
    x = ref_convt1d(x, params["w2"], params["b2"], relu=True)
    x = ref_convt1d(x, params["w3"], params["b3"], relu=False)
    return x


if __name__ == "__main__":
    # Small, module-consistent shapes.
    in_channels = 4
    out_channels = (8, 12, 16)
    kernel_size = 3          # odd -> padding = K//2 keeps length
    B, L = 2, 8

    key = jax.random.PRNGKey(0)
    kx, kp = jax.random.split(key)
    params = init_decoder_params(kp, in_channels, out_channels, kernel_size)
    kparams = prepare_decoder_params(params)     # one-time weight prep

    # Flattened latent, exactly what `x.view(B, out_channels[-1], -1)` expects.
    x = jax.random.normal(kx, (B, out_channels[2] * L), jnp.float32)

    fwd = jax.jit(functools.partial(decoder_forward,
                                    in_channels=in_channels,
                                    out_channels=out_channels,
                                    kernel_size=kernel_size))
    y = jax.block_until_ready(fwd(x, kparams))

    assert y.shape == (B, in_channels, L), y.shape

    y_ref = ref_decoder(x, params, out_channels)
    np.testing.assert_allclose(np.asarray(y), y_ref, rtol=1e-4, atol=1e-4)

    print("KERNEL_OK")
</pallas_src>

<mosaic_0001>
module attributes {stable_mosaic.version = 11 : i64} {
  func.func @decoder_kernel(%arg0: memref<56x128xf32, #tpu.memory_space<vmem>>, %arg1: memref<48x1xi32, #tpu.memory_space<vmem>>, %arg2: memref<3x128x128xf32, #tpu.memory_space<vmem>>, %arg3: memref<1x128xf32, #tpu.memory_space<vmem>>, %arg4: memref<3x128x128xf32, #tpu.memory_space<vmem>>, %arg5: memref<1x128xf32, #tpu.memory_space<vmem>>, %arg6: memref<3x128x128xf32, #tpu.memory_space<vmem>>, %arg7: memref<1x128xf32, #tpu.memory_space<vmem>>, %arg8: memref<48x128xf32, #tpu.memory_space<vmem>>, %arg9: memref<56x128xf32, #tpu.memory_space<vmem>>, %arg10: memref<56x128xf32, #tpu.memory_space<vmem>>) attributes {dimension_semantics = [], scalar_prefetch = 0 : i64, scratch_operands = 2 : i64, tpu.core_type = #tpu.core_type<tc>} {
    %cst = arith.constant 0.000000e+00 : f32
    %0 = vector.broadcast %cst : f32 to vector<8x128xf32>
    %c48 = arith.constant 48 : index
    %c0 = arith.constant 0 : index
    %1 = vector.load %arg9[%c48, %c0] : memref<56x128xf32, #tpu.memory_space<vmem>>, vector<8x128xf32>
    tpu.vector_store %arg9[%c48, %c0], %0 {strides = array<i32>} : memref<56x128xf32, #tpu.memory_space<vmem>>, vector<8x128xf32>,
    %c48_0 = arith.constant 48 : index
    %c0_1 = arith.constant 0 : index
    %2 = vector.load %arg10[%c48_0, %c0_1] : memref<56x128xf32, #tpu.memory_space<vmem>>, vector<8x128xf32>
    tpu.vector_store %arg10[%c48_0, %c0_1], %0 {strides = array<i32>} : memref<56x128xf32, #tpu.memory_space<vmem>>, vector<8x128xf32>,
    %c0_2 = arith.constant 0 : index
    %c0_3 = arith.constant 0 : index
    %3 = vector.load %arg1[%c0_2, %c0_3] : memref<48x1xi32, #tpu.memory_space<vmem>>, vector<48x1xi32>
    %4 = vector.shape_cast %3 : vector<48x1xi32> to vector<48x1xi32>
    %5 = vector.broadcast %4 : vector<48x1xi32> to vector<48x128xi32>
    %c0_4 = arith.constant 0 : index
    %c0_5 = arith.constant 0 : index
    %6 = vector.load %arg0[%c0_4, %c0_5] : memref<56x128xf32, #tpu.memory_space<vmem>>, vector<48x128xf32>
    %c0_6 = arith.constant 0 : index
    %c0_7 = arith.constant 0 : index
    %c0_8 = arith.constant 0 : index
    %7 = vector.load %arg2[%c0_6, %c0_7, %c0_8] : memref<3x128x128xf32, #tpu.memory_space<vmem>>, vector<1x128x128xf32>
    %8 = vector.shape_cast %7 : vector<1x128x128xf32> to vector<128x128xf32>
    %cst_9 = arith.constant dense<0.000000e+00> : vector<48x128xf32>
    %9 = tpu.matmul %6, %8, %cst_9 {dimension_numbers = #tpu.dot_dimension_numbers<[1], [0], [0], [1], [0, 0, 1, 1], [], []>} : vector<48x128xf32>, vector<128x128xf32>, vector<48x128xf32> -> vector<48x128xf32>
    %c1 = arith.constant 1 : index
    %c0_10 = arith.constant 0 : index
    %10 = vector.load %arg0[%c1, %c0_10] : memref<56x128xf32, #tpu.memory_space<vmem>>, vector<48x128xf32>
    %c1_11 = arith.constant 1 : index
    %c0_12 = arith.constant 0 : index
    %c0_13 = arith.constant 0 : index
    %11 = vector.load %arg2[%c1_11, %c0_12, %c0_13] : memref<3x128x128xf32, #tpu.memory_space<vmem>>, vector<1x128x128xf32>
    %12 = vector.shape_cast %11 : vector<1x128x128xf32> to vector<128x128xf32>
    %cst_14 = arith.constant dense<0.000000e+00> : vector<48x128xf32>
    %13 = tpu.matmul %10, %12, %cst_14 {dimension_numbers = #tpu.dot_dimension_numbers<[1], [0], [0], [1], [0, 0, 1, 1], [], []>} : vector<48x128xf32>, vector<128x128xf32>, vector<48x128xf32> -> vector<48x128xf32>
    %14 = arith.addf %9, %13 : vector<48x128xf32>
    %c2 = arith.constant 2 : index
    %c0_15 = arith.constant 0 : index
    %15 = vector.load %arg0[%c2, %c0_15] : memref<56x128xf32, #tpu.memory_space<vmem>>, vector<48x128xf32>
    %c2_16 = arith.constant 2 : index
    %c0_17 = arith.constant 0 : index
    %c0_18 = arith.constant 0 : index
    %16 = vector.load %arg2[%c2_16, %c0_17, %c0_18] : memref<3x128x128xf32, #tpu.memory_space<vmem>>, vector<1x128x128xf32>
    %17 = vector.shape_cast %16 : vector<1x128x128xf32> to vector<128x128xf32>
    %cst_19 = arith.constant dense<0.000000e+00> : vector<48x128xf32>
    %18 = tpu.matmul %15, %17, %cst_19 {dimension_numbers = #tpu.dot_dimension_numbers<[1], [0], [0], [1], [0, 0, 1, 1], [], []>} : vector<48x128xf32>, vector<128x128xf32>, vector<48x128xf32> -> vector<48x128xf32>
    %19 = arith.addf %14, %18 : vector<48x128xf32>
    %c0_20 = arith.constant 0 : index
    %c0_21 = arith.constant 0 : index
    %20 = vector.load %arg3[%c0_20, %c0_21] : memref<1x128xf32, #tpu.memory_space<vmem>>, vector<1x128xf32>
    %21 = vector.broadcast %20 : vector<1x128xf32> to vector<48x128xf32>
    %22 = arith.addf %19, %21 : vector<48x128xf32>
    %cst_22 = arith.constant 0.000000e+00 : f32
    %23 = vector.broadcast %cst_22 : f32 to vector<48x128xf32>
    %24 = arith.maximumf %22, %23 : vector<48x128xf32>
    %c7_i32 = arith.constant 7 : i32
    %25 = vector.broadcast %c7_i32 : i32 to vector<48x128xi32>
    %26 = arith.cmpi sge, %5, %25 : vector<48x128xi32>
    %c15_i32 = arith.constant 15 : i32
    %27 = vector.broadcast %c15_i32 : i32 to vector<48x128xi32>
    %28 = arith.cmpi slt, %5, %27 : vector<48x128xi32>
    %29 = arith.andi %26, %28 : vector<48x128xi1>
    %cst_23 = arith.constant 0.000000e+00 : f32
    %30 = vector.broadcast %cst_23 : f32 to vector<48x128xf32>
    %31 = arith.select %29, %24, %30 : vector<48x128xi1>, vector<48x128xf32>
    %c0_24 = arith.constant 0 : index
    %c0_25 = arith.constant 0 : index
    %32 = vector.load %arg9[%c0_24, %c0_25] : memref<56x128xf32, #tpu.memory_space<vmem>>, vector<48x128xf32>
    tpu.vector_store %arg9[%c0_24, %c0_25], %31 {strides = array<i32>} : memref<56x128xf32, #tpu.memory_space<vmem>>, vector<48x128xf32>,
    %c0_26 = arith.constant 0 : index
    %c0_27 = arith.constant 0 : index
    %33 = vector.load %arg9[%c0_26, %c0_27] : memref<56x128xf32, #tpu.memory_space<vmem>>, vector<48x128xf32>
    %c0_28 = arith.constant 0 : index
    %c0_29 = arith.constant 0 : index
    %c0_30 = arith.constant 0 : index
    %34 = vector.load %arg4[%c0_28, %c0_29, %c0_30] : memref<3x128x128xf32, #tpu.memory_space<vmem>>, vector<1x128x128xf32>
    %35 = vector.shape_cast %34 : vector<1x128x128xf32> to vector<128x128xf32>
    %cst_31 = arith.constant dense<0.000000e+00> : vector<48x128xf32>
    %36 = tpu.matmul %33, %35, %cst_31 {dimension_numbers = #tpu.dot_dimension_numbers<[1], [0], [0], [1], [0, 0, 1, 1], [], []>} : vector<48x128xf32>, vector<128x128xf32>, vector<48x128xf32> -> vector<48x128xf32>
    %c1_32 = arith.constant 1 : index
    %c0_33 = arith.constant 0 : index
    %37 = vector.load %arg9[%c1_32, %c0_33] : memref<56x128xf32, #tpu.memory_space<vmem>>, vector<48x128xf32>
    %c1_34 = arith.constant 1 : index
    %c0_35 = arith.constant 0 : index
    %c0_36 = arith.constant 0 : index
    %38 = vector.load %arg4[%c1_34, %c0_35, %c0_36] : memref<3x128x128xf32, #tpu.memory_space<vmem>>, vector<1x128x128xf32>
    %39 = vector.shape_cast %38 : vector<1x128x128xf32> to vector<128x128xf32>
    %cst_37 = arith.constant dense<0.000000e+00> : vector<48x128xf32>
    %40 = tpu.matmul %37, %39, %cst_37 {dimension_numbers = #tpu.dot_dimension_numbers<[1], [0], [0], [1], [0, 0, 1, 1], [], []>} : vector<48x128xf32>, vector<128x128xf32>, vector<48x128xf32> -> vector<48x128xf32>
    %41 = arith.addf %36, %40 : vector<48x128xf32>
    %c2_38 = arith.constant 2 : index
    %c0_39 = arith.constant 0 : index
    %42 = vector.load %arg9[%c2_38, %c0_39] : memref<56x128xf32, #tpu.memory_space<vmem>>, vector<48x128xf32>
    %c2_40 = arith.constant 2 : index
    %c0_41 = arith.constant 0 : index
    %c0_42 = arith.constant 0 : index
    %43 = vector.load %arg4[%c2_40, %c0_41, %c0_42] : memref<3x128x128xf32, #tpu.memory_space<vmem>>, vector<1x128x128xf32>
    %44 = vector.shape_cast %43 : vector<1x128x128xf32> to vector<128x128xf32>
    %cst_43 = arith.constant dense<0.000000e+00> : vector<48x128xf32>
    %45 = tpu.matmul %42, %44, %cst_43 {dimension_numbers = #tpu.dot_dimension_numbers<[1], [0], [0], [1], [0, 0, 1, 1], [], []>} : vector<48x128xf32>, vector<128x128xf32>, vector<48x128xf32> -> vector<48x128xf32>
    %46 = arith.addf %41, %45 : vector<48x128xf32>
    %c0_44 = arith.constant 0 : index
    %c0_45 = arith.constant 0 : index
    %47 = vector.load %arg5[%c0_44, %c0_45] : memref<1x128xf32, #tpu.memory_space<vmem>>, vector<1x128xf32>
    %48 = vector.broadcast %47 : vector<1x128xf32> to vector<48x128xf32>
    %49 = arith.addf %46, %48 : vector<48x128xf32>
    %cst_46 = arith.constant 0.000000e+00 : f32
    %50 = vector.broadcast %cst_46 : f32 to vector<48x128xf32>
    %51 = arith.maximumf %49, %50 : vector<48x128xf32>
    %c6_i32 = arith.constant 6 : i32
    %52 = vector.broadcast %c6_i32 : i32 to vector<48x128xi32>
    %53 = arith.cmpi sge, %5, %52 : vector<48x128xi32>
    %c14_i32 = arith.constant 14 : i32
    %54 = vector.broadcast %c14_i32 : i32 to vector<48x128xi32>
    %55 = arith.cmpi slt, %5, %54 : vector<48x128xi32>
    %56 = arith.andi %53, %55 : vector<48x128xi1>
    %cst_47 = arith.constant 0.000000e+00 : f32
    %57 = vector.broadcast %cst_47 : f32 to vector<48x128xf32>
    %58 = arith.select %56, %51, %57 : vector<48x128xi1>, vector<48x128xf32>
    %c0_48 = arith.constant 0 : index
    %c0_49 = arith.constant 0 : index
    %59 = vector.load %arg10[%c0_48, %c0_49] : memref<56x128xf32, #tpu.memory_space<vmem>>, vector<48x128xf32>
    tpu.vector_store %arg10[%c0_48, %c0_49], %58 {strides = array<i32>} : memref<56x128xf32, #tpu.memory_space<vmem>>, vector<48x128xf32>,
    %c0_50 = arith.constant 0 : index
    %c0_51 = arith.constant 0 : index
    %60 = vector.load %arg10[%c0_50, %c0_51] : memref<56x128xf32, #tpu.memory_space<vmem>>, vector<48x128xf32>
    %c0_52 = arith.constant 0 : index
    %c0_53 = arith.constant 0 : index
    %c0_54 = arith.constant 0 : index
    %61 = vector.load %arg6[%c0_52, %c0_53, %c0_54] : memref<3x128x128xf32, #tpu.memory_space<vmem>>, vector<1x128x128xf32>
    %62 = vector.shape_cast %61 : vector<1x128x128xf32> to vector<128x128xf32>
    %cst_55 = arith.constant dense<0.000000e+00> : vector<48x128xf32>
    %63 = tpu.matmul %60, %62, %cst_55 {dimension_numbers = #tpu.dot_dimension_numbers<[1], [0], [0], [1], [0, 0, 1, 1], [], []>} : vector<48x128xf32>, vector<128x128xf32>, vector<48x128xf32> -> vector<48x128xf32>
    %c1_56 = arith.constant 1 : index
    %c0_57 = arith.constant 0 : index
    %64 = vector.load %arg10[%c1_56, %c0_57] : memref<56x128xf32, #tpu.memory_space<vmem>>, vector<48x128xf32>
    %c1_58 = arith.constant 1 : index
    %c0_59 = arith.constant 0 : index
    %c0_60 = arith.constant 0 : index
    %65 = vector.load %arg6[%c1_58, %c0_59, %c0_60] : memref<3x128x128xf32, #tpu.memory_space<vmem>>, vector<1x128x128xf32>
    %66 = vector.shape_cast %65 : vector<1x128x128xf32> to vector<128x128xf32>
    %cst_61 = arith.constant dense<0.000000e+00> : vector<48x128xf32>
    %67 = tpu.matmul %64, %66, %cst_61 {dimension_numbers = #tpu.dot_dimension_numbers<[1], [0], [0], [1], [0, 0, 1, 1], [], []>} : vector<48x128xf32>, vector<128x128xf32>, vector<48x128xf32> -> vector<48x128xf32>
    %68 = arith.addf %63, %67 : vector<48x128xf32>
    %c2_62 = arith.constant 2 : index
    %c0_63 = arith.constant 0 : index
    %69 = vector.load %arg10[%c2_62, %c0_63] : memref<56x128xf32, #tpu.memory_space<vmem>>, vector<48x128xf32>
    %c2_64 = arith.constant 2 : index
    %c0_65 = arith.constant 0 : index
    %c0_66 = arith.constant 0 : index
    %70 = vector.load %arg6[%c2_64, %c0_65, %c0_66] : memref<3x128x128xf32, #tpu.memory_space<vmem>>, vector<1x128x128xf32>
    %71 = vector.shape_cast %70 : vector<1x128x128xf32> to vector<128x128xf32>
    %cst_67 = arith.constant dense<0.000000e+00> : vector<48x128xf32>
    %72 = tpu.matmul %69, %71, %cst_67 {dimension_numbers = #tpu.dot_dimension_numbers<[1], [0], [0], [1], [0, 0, 1, 1], [], []>} : vector<48x128xf32>, vector<128x128xf32>, vector<48x128xf32> -> vector<48x128xf32>
    %73 = arith.addf %68, %72 : vector<48x128xf32>
    %c0_68 = arith.constant 0 : index
    %c0_69 = arith.constant 0 : index
    %74 = vector.load %arg7[%c0_68, %c0_69] : memref<1x128xf32, #tpu.memory_space<vmem>>, vector<1x128xf32>
    %75 = vector.broadcast %74 : vector<1x128xf32> to vector<48x128xf32>
    %76 = arith.addf %73, %75 : vector<48x128xf32>
    %c0_70 = arith.constant 0 : index
    %c0_71 = arith.constant 0 : index
    %77 = vector.load %arg8[%c0_70, %c0_71] : memref<48x128xf32, #tpu.memory_space<vmem>>, vector<48x128xf32>
    tpu.vector_store %arg8[%c0_70, %c0_71], %76 {strides = array<i32>} : memref<48x128xf32, #tpu.memory_space<vmem>>, vector<48x128xf32>,
    return
  }
}

</mosaic_0001>

<llo_original>
// kernel: decoder_forward.1
$region0: #{decoder_forward.1}
  #allocation0 [shape = 'u32[]', space=smem, size = 0x4, offset = 0x4, fixed_abs, tag = 'smem constant byte address 0x4 - core index']
  #allocation1 [shape = 'u32[72,128]{1,0:T(1,128)}', space=vmem, size = 0x9000, scoped, tag = 'internal scratch']
  #allocation2 [shape = 'f32[56,128]{1,0:T(8,128)}', space=vmem, size = 0x7000, scoped, tag = 'scratch operand']
  #allocation3 [shape = 'f32[56,128]{1,0:T(8,128)}', space=vmem, size = 0x7000, scoped, tag = 'scratch operand']
  %s0 = inlined_call_operand.vmem [shape: f32[56,128], index: 0, kind: input, shape index: {}]
  %s1 = inlined_call_operand.vmem [shape: s32[48,1], index: 1, kind: input, shape index: {}]
  %s2 = inlined_call_operand.hbm [shape: f32[3,128,128], index: 2, kind: input, shape index: {}]
  %s3 = inlined_call_operand.vmem [shape: f32[1,128], index: 3, kind: input, shape index: {}]
  %s4 = inlined_call_operand.hbm [shape: f32[3,128,128], index: 4, kind: input, shape index: {}]
  %s5 = inlined_call_operand.vmem [shape: f32[1,128], index: 5, kind: input, shape index: {}]
  %s6 = inlined_call_operand.hbm [shape: f32[3,128,128], index: 6, kind: input, shape index: {}]
  %s7 = inlined_call_operand.vmem [shape: f32[1,128], index: 7, kind: input, shape index: {}]
  %s8 = inlined_call_operand.vmem [shape: f32[48,128], index: 8, kind: output, shape index: {}]
  %s9 = sld [smem:[#allocation0]]
  $region54: #{decoder_forward.1} parent=0
    _
  %s11 = ssub.s32 1, %s9
  %s12 = scalar_select 0, %s11, %s9
  $region1: #{decoder_forward.1} parent=0
    #allocation4 [shape = 'u8[196608]{0}', space=vmem, size = 0x30000, scoped, tag = 'input window, operand 2, single buffered']
    #allocation5 [shape = 's32[1]{0}', space=sflag, size = 0x4, scoped, tag = 'scoped memory for decoder_forward.1']
    #allocation6 [shape = 'u8[196608]{0}', space=vmem, size = 0x30000, scoped, tag = 'input window, operand 4, single buffered']
    #allocation7 [shape = 's32[1]{0}', space=sflag, size = 0x4, scoped, tag = 'scoped memory for decoder_forward.1']
    #allocation8 [shape = 'u8[196608]{0}', space=vmem, size = 0x30000, scoped, tag = 'input window, operand 6, single buffered']
    %13 = vsyncpa [#allocation5], 0
    %14 = vsyncpa [#allocation7], 0
    // Predicated region
    $region2: #{decoder_forward.1} parent=1 // pred_check
      _
    $region3: #{decoder_forward.1} parent=1 // pred_check_branch
      %16 = sbr.rel (0) target = $region5
    $region4: #{decoder_forward.1} parent=1 // pred_region
      _
    $region5: #{decoder_forward.1} parent=1 // pred_fallthru
      _
    // Predicated region
    $region6: #{decoder_forward.1} parent=1 // pred_check
      _
    $region7: #{decoder_forward.1} parent=1 // pred_check_branch
      %18 = sbr.rel (0) target = $region9
    $region8: #{decoder_forward.1} parent=1 // pred_region
      _
    $region9: #{decoder_forward.1} parent=1 // pred_fallthru
      _
    // Predicated region
    $region10: #{decoder_forward.1} parent=1 // pred_check
      _
    $region11: #{decoder_forward.1} parent=1 // pred_check_branch
      %20 = sbr.rel (0) target = $region13
    $region12: #{decoder_forward.1} parent=1 // pred_region
      %22 = vsyncadd [#allocation5], 0
      %s23 = sshll.u32 %s2, 4
      %s24 = int_to_ptr.hbm [resolvable:$true] %s23
      %s25 = sshll.u32 [#allocation4], 4
      %s26 = int_to_ptr.vmem [resolvable:$true] %s25
      %31 = dma.hbm_to_vmem [thread:$0]  %s24, 6144, %s26, [#allocation5], 128, 128, 8
    $region13: #{decoder_forward.1} parent=1 // pred_fallthru
      _
    // Predicated region
    $region14: #{decoder_forward.1} parent=1 // pred_check
      _
    $region15: #{decoder_forward.1} parent=1 // pred_check_branch
      %33 = sbr.rel (0) target = $region17
    $region16: #{decoder_forward.1} parent=1 // pred_region
      _
    $region17: #{decoder_forward.1} parent=1 // pred_fallthru
      _
    // Predicated region
    $region18: #{decoder_forward.1} parent=1 // pred_check
      _
    $region19: #{decoder_forward.1} parent=1 // pred_check_branch
      %35 = sbr.rel (0) target = $region21
    $region20: #{decoder_forward.1} parent=1 // pred_region
      %37 = vsyncadd [#allocation7], 0
      %s38 = sshll.u32 %s4, 4
      %s39 = int_to_ptr.hbm [resolvable:$true] %s38
      %s40 = sshll.u32 [#allocation6], 4
      %s41 = int_to_ptr.vmem [resolvable:$true] %s40
      %46 = dma.hbm_to_vmem [thread:$0]  %s39, 6144, %s41, [#allocation7], 128, 128, 8
    $region21: #{decoder_forward.1} parent=1 // pred_fallthru
      _
    // Predicated region
    $region22: #{decoder_forward.1} parent=1 // pred_check
      _
    $region23: #{decoder_forward.1} parent=1 // pred_check_branch
      %48 = sbr.rel (0) target = $region25
    $region24: #{decoder_forward.1} parent=1 // pred_region
      _
    $region25: #{decoder_forward.1} parent=1 // pred_fallthru
      _
    // Predicated region
    $region26: #{decoder_forward.1} parent=1 // pred_check
      _
    $region27: #{decoder_forward.1} parent=1 // pred_check_branch
      %50 = sbr.rel (0) target = $region29
    $region28: #{decoder_forward.1} parent=1 // pred_region
      %52 = vsyncadd [#allocation7], 0
      %s53 = sshll.u32 %s6, 4
      %s54 = int_to_ptr.hbm [resolvable:$true] %s53
      %s55 = sshll.u32 [#allocation8], 4
      %s56 = int_to_ptr.vmem [resolvable:$true] %s55
      %61 = dma.hbm_to_vmem [thread:$0]  %s54, 6144, %s56, [#allocation7], 128, 128, 8
    $region29: #{decoder_forward.1} parent=1 // pred_fallthru
      _
    // Predicated region
    $region30: #{decoder_forward.1} parent=1 // pred_check
      _
    $region31: #{decoder_forward.1} parent=1 // pred_check_branch
      %63 = sbr.rel (0) target = $region33
    $region32: #{decoder_forward.1} parent=1 // pred_region
      _
    $region33: #{decoder_forward.1} parent=1 // pred_fallthru
      _
    // Predicated region
    $region34: #{decoder_forward.1} parent=1 // pred_check
      _
    $region35: #{decoder_forward.1} parent=1 // pred_check_branch
      %65 = sbr.rel (0) target = $region37
    $region36: #{decoder_forward.1} parent=1 // pred_region
      %67 = dma.done [#allocation5], 6144
    $region37: #{decoder_forward.1} parent=1 // pred_fallthru
      _
    // Predicated region
    $region38: #{decoder_forward.1} parent=1 // pred_check
      _
    $region39: #{decoder_forward.1} parent=1 // pred_check_branch
      %69 = sbr.rel (0) target = $region41
    $region40: #{decoder_forward.1} parent=1 // pred_region
      %71 = dma.done [#allocation7], 6144
    $region41: #{decoder_forward.1} parent=1 // pred_fallthru
      _
    // Predicated region
    $region42: #{decoder_forward.1} parent=1 // pred_check
      _
    $region43: #{decoder_forward.1} parent=1 // pred_check_branch
      %73 = sbr.rel (0) target = $region45
    $region44: #{decoder_forward.1} parent=1 // pred_region
      %75 = dma.done [#allocation7], 6144
    $region45: #{decoder_forward.1} parent=1 // pred_fallthru
      _
    %76 = vst [vmem:[#allocation2 + $0x30] sm:$0xff] 0.0
    %77 = vst [vmem:[#allocation3 + $0x30] sm:$0xff] 0.0
    %v78 = vld [vmem:[%s1] sm:$0xff]
    %v79 = vld [vmem:[%s1 + $0x8] sm:$0xff]
    %v80 = vld [vmem:[%s1 + $0x10] sm:$0xff]
    %v81 = vld [vmem:[%s1 + $0x18] sm:$0xff]
    %v82 = vld [vmem:[%s1 + $0x20] sm:$0xff]
    %v83 = vld [vmem:[%s1 + $0x28] sm:$0xff]
    %84 = vset.pattern.permute.xlu0 0
    %85 = vperm.xlu0 %84, %v78
    %v86 = vpop.permute.xlu0 %85
    %87 = vset.pattern.permute.xlu0 0
    %88 = vperm.xlu0 %87, %v79
    %v89 = vpop.permute.xlu0 %88
    %90 = vset.pattern.permute.xlu0 0
    %91 = vperm.xlu0 %90, %v80
    %v92 = vpop.permute.xlu0 %91
    %93 = vset.pattern.permute.xlu0 0
    %94 = vperm.xlu0 %93, %v81
    %v95 = vpop.permute.xlu0 %94
    %96 = vset.pattern.permute.xlu0 0
    %97 = vperm.xlu0 %96, %v82
    %v98 = vpop.permute.xlu0 %97
    %99 = vset.pattern.permute.xlu0 0
    %100 = vperm.xlu0 %99, %v83
    %v101 = vpop.permute.xlu0 %100
    %v102 = vld [vmem:[%s0] sm:$0xff]
    %v103 = vld [vmem:[%s0 + $0x8] sm:$0xff]
    %v104 = vld [vmem:[%s0 + $0x10] sm:$0xff]
    %v105 = vld [vmem:[%s0 + $0x18] sm:$0xff]
    %v106 = vld [vmem:[%s0 + $0x20] sm:$0xff]
    %v107 = vld [vmem:[%s0 + $0x28] sm:$0xff]
    %v108 = vld [vmem:[#allocation4] sm:$0xff]
    %v109 = vld [vmem:[#allocation4 + $0x8] sm:$0xff]
    %v110 = vld [vmem:[#allocation4 + $0x10] sm:$0xff]
    %v111 = vld [vmem:[#allocation4 + $0x18] sm:$0xff]
    %v112 = vld [vmem:[#allocation4 + $0x20] sm:$0xff]
    %v113 = vld [vmem:[#allocation4 + $0x28] sm:$0xff]
    %v114 = vld [vmem:[#allocation4 + $0x30] sm:$0xff]
    %v115 = vld [vmem:[#allocation4 + $0x38] sm:$0xff]
    %v116 = vld [vmem:[#allocation4 + $0x40] sm:$0xff]
    %v117 = vld [vmem:[#allocation4 + $0x48] sm:$0xff]
    %v118 = vld [vmem:[#allocation4 + $0x50] sm:$0xff]
    %v119 = vld [vmem:[#allocation4 + $0x58] sm:$0xff]
    %v120 = vld [vmem:[#allocation4 + $0x60] sm:$0xff]
    %v121 = vld [vmem:[#allocation4 + $0x68] sm:$0xff]
    %v122 = vld [vmem:[#allocation4 + $0x70] sm:$0xff]
    %v123 = vld [vmem:[#allocation4 + $0x78] sm:$0xff]
    %v124 = vld [vmem:[%s0 + $0x1] sm:$0xff]
    %v125 = vld [vmem:[%s0 + $0x9] sm:$0xff]
    %v126 = vld [vmem:[%s0 + $0x11] sm:$0xff]
    %v127 = vld [vmem:[%s0 + $0x19] sm:$0xff]
    %v128 = vld [vmem:[%s0 + $0x21] sm:$0xff]
    %v129 = vld [vmem:[%s0 + $0x29] sm:$0xff]
    %s130 = scalar_lea.vmem [#allocation4], 128
    %v131 = vld [vmem:[%s130] sm:$0xff]
    %v132 = vld [vmem:[%s130 + $0x8] sm:$0xff]
    %v133 = vld [vmem:[%s130 + $0x10] sm:$0xff]
    %v134 = vld [vmem:[%s130 + $0x18] sm:$0xff]
    %v135 = vld [vmem:[%s130 + $0x20] sm:$0xff]
    %v136 = vld [vmem:[%s130 + $0x28] sm:$0xff]
    %v137 = vld [vmem:[%s130 + $0x30] sm:$0xff]
    %v138 = vld [vmem:[%s130 + $0x38] sm:$0xff]
    %v139 = vld [vmem:[%s130 + $0x40] sm:$0xff]
    %v140 = vld [vmem:[%s130 + $0x48] sm:$0xff]
    %v141 = vld [vmem:[%s130 + $0x50] sm:$0xff]
    %v142 = vld [vmem:[%s130 + $0x58] sm:$0xff]
    %v143 = vld [vmem:[%s130 + $0x60] sm:$0xff]
    %v144 = vld [vmem:[%s130 + $0x68] sm:$0xff]
    %v145 = vld [vmem:[%s130 + $0x70] sm:$0xff]
    %v146 = vld [vmem:[%s130 + $0x78] sm:$0xff]
    %147 = vmatpush.msra.mxu0 %v146
    %148 = vmatpush.msra.mxu0 %v145
    %149 = vmatpush.msra.mxu0 %v144
    %150 = vmatpush.msra.mxu0 %v143
    %151 = vmatpush.msra.mxu0 %v142
    %152 = vmatpush.msra.mxu0 %v141
    %153 = vmatpush.msra.mxu0 %v140
    %154 = vmatpush.msra.mxu0 %v139
    %155 = vmatpush.msra.mxu0 %v138
    %156 = vmatpush.msra.mxu0 %v137
    %157 = vmatpush.msra.mxu0 %v136
    %158 = vmatpush.msra.mxu0 %v135
    %159 = vmatpush.msra.mxu0 %v134
    %160 = vmatpush.msra.mxu0 %v133
    %161 = vmatpush.msra.mxu0 %v132
    %162 = vmatpush.msra.mxu0 %v131
    %163 = vmatmul.f32.gmra.mxu0 %v124
    %v164 = vpop.f32.mrf.mxu0
    %v165 = vadd.f32 0.0, %v164
    %166 = vmatmul.f32.gmra.mxu0 %v125
    %v167 = vpop.f32.mrf.mxu0
    %v168 = vadd.f32 0.0, %v167
    %169 = vmatmul.f32.gmra.mxu0 %v126
    %v170 = vpop.f32.mrf.mxu0
    %v171 = vadd.f32 0.0, %v170
    %172 = vmatmul.f32.gmra.mxu0 %v127
    %v173 = vpop.f32.mrf.mxu0
    %v174 = vadd.f32 0.0, %v173
    %175 = vmatmul.f32.gmra.mxu0 %v128
    %v176 = vpop.f32.mrf.mxu0
    %v177 = vadd.f32 0.0, %v176
    %178 = vmatmul.f32.gmra.mxu0 %v129
    %v179 = vpop.f32.mrf.mxu0
    %v180 = vadd.f32 0.0, %v179
    %181 = vdwg.mxu0
    %182 = vmatpush.msra.mxu0 %v123
    %183 = vmatpush.msra.mxu0 %v122
    %184 = vmatpush.msra.mxu0 %v121
    %185 = vmatpush.msra.mxu0 %v120
    %186 = vmatpush.msra.mxu0 %v119
    %187 = vmatpush.msra.mxu0 %v118
    %188 = vmatpush.msra.mxu0 %v117
    %189 = vmatpush.msra.mxu0 %v116
    %190 = vmatpush.msra.mxu0 %v115
    %191 = vmatpush.msra.mxu0 %v114
    %192 = vmatpush.msra.mxu0 %v113
    %193 = vmatpush.msra.mxu0 %v112
    %194 = vmatpush.msra.mxu0 %v111
    %195 = vmatpush.msra.mxu0 %v110
    %196 = vmatpush.msra.mxu0 %v109
    %197 = vmatpush.msra.mxu0 %v108
    %198 = vmatmul.f32.gmra.mxu0 %v102
    %v199 = vpop.f32.mrf.mxu0
    %v200 = vadd.f32 %v165, %v199
    %201 = vmatmul.f32.gmra.mxu0 %v103
    %v202 = vpop.f32.mrf.mxu0
    %v203 = vadd.f32 %v168, %v202
    %204 = vmatmul.f32.gmra.mxu0 %v104
    %v205 = vpop.f32.mrf.mxu0
    %v206 = vadd.f32 %v171, %v205
    %207 = vmatmul.f32.gmra.mxu0 %v105
    %v208 = vpop.f32.mrf.mxu0
    %v209 = vadd.f32 %v174, %v208
    %210 = vmatmul.f32.gmra.mxu0 %v106
    %v211 = vpop.f32.mrf.mxu0
    %v212 = vadd.f32 %v177, %v211
    %213 = vmatmul.f32.gmra.mxu0 %v107
    %v214 = vpop.f32.mrf.mxu0
    %v215 = vadd.f32 %v180, %v214
    %216 = vdwg.mxu0
    %v217 = vld [vmem:[%s0 + $0x2] sm:$0xff]
    %v218 = vld [vmem:[%s0 + $0xa] sm:$0xff]
    %v219 = vld [vmem:[%s0 + $0x12] sm:$0xff]
    %v220 = vld [vmem:[%s0 + $0x1a] sm:$0xff]
    %v221 = vld [vmem:[%s0 + $0x22] sm:$0xff]
    %v222 = vld [vmem:[%s0 + $0x2a] sm:$0xff]
    %s223 = scalar_lea.vmem [#allocation4], 256
    %v224 = vld [vmem:[%s223] sm:$0xff]
    %v225 = vld [vmem:[%s223 + $0x8] sm:$0xff]
    %v226 = vld [vmem:[%s223 + $0x10] sm:$0xff]
    %v227 = vld [vmem:[%s223 + $0x18] sm:$0xff]
    %v228 = vld [vmem:[%s223 + $0x20] sm:$0xff]
    %v229 = vld [vmem:[%s223 + $0x28] sm:$0xff]
    %v230 = vld [vmem:[%s223 + $0x30] sm:$0xff]
    %v231 = vld [vmem:[%s223 + $0x38] sm:$0xff]
    %v232 = vld [vmem:[%s223 + $0x40] sm:$0xff]
    %v233 = vld [vmem:[%s223 + $0x48] sm:$0xff]
    %v234 = vld [vmem:[%s223 + $0x50] sm:$0xff]
    %v235 = vld [vmem:[%s223 + $0x58] sm:$0xff]
    %v236 = vld [vmem:[%s223 + $0x60] sm:$0xff]
    %v237 = vld [vmem:[%s223 + $0x68] sm:$0xff]
    %v238 = vld [vmem:[%s223 + $0x70] sm:$0xff]
    %v239 = vld [vmem:[%s223 + $0x78] sm:$0xff]
    %240 = vmatpush.msra.mxu0 %v239
    %241 = vmatpush.msra.mxu0 %v238
    %242 = vmatpush.msra.mxu0 %v237
    %243 = vmatpush.msra.mxu0 %v236
    %244 = vmatpush.msra.mxu0 %v235
    %245 = vmatpush.msra.mxu0 %v234
    %246 = vmatpush.msra.mxu0 %v233
    %247 = vmatpush.msra.mxu0 %v232
    %248 = vmatpush.msra.mxu0 %v231
    %249 = vmatpush.msra.mxu0 %v230
    %250 = vmatpush.msra.mxu0 %v229
    %251 = vmatpush.msra.mxu0 %v228
    %252 = vmatpush.msra.mxu0 %v227
    %253 = vmatpush.msra.mxu0 %v226
    %254 = vmatpush.msra.mxu0 %v225
    %255 = vmatpush.msra.mxu0 %v224
    %256 = vmatmul.f32.gmra.mxu0 %v217
    %v257 = vpop.f32.mrf.mxu0
    %v258 = vadd.f32 0.0, %v257
    %259 = vmatmul.f32.gmra.mxu0 %v218
    %v260 = vpop.f32.mrf.mxu0
    %v261 = vadd.f32 0.0, %v260
    %262 = vmatmul.f32.gmra.mxu0 %v219
    %v263 = vpop.f32.mrf.mxu0
    %v264 = vadd.f32 0.0, %v263
    %265 = vmatmul.f32.gmra.mxu0 %v220
    %v266 = vpop.f32.mrf.mxu0
    %v267 = vadd.f32 0.0, %v266
    %268 = vmatmul.f32.gmra.mxu0 %v221
    %v269 = vpop.f32.mrf.mxu0
    %v270 = vadd.f32 0.0, %v269
    %271 = vmatmul.f32.gmra.mxu0 %v222
    %v272 = vpop.f32.mrf.mxu0
    %v273 = vadd.f32 0.0, %v272
    %274 = vdwg.mxu0
    %v275 = vadd.f32 %v200, %v258
    %v276 = vadd.f32 %v203, %v261
    %v277 = vadd.f32 %v206, %v264
    %v278 = vadd.f32 %v209, %v267
    %v279 = vadd.f32 %v212, %v270
    %v280 = vadd.f32 %v215, %v273
    %v281 = vld [vmem:[%s3] sm:$0x1]
    %v283 = vperm.slane %v281, 0
    %v285 = vadd.f32 %v275, %v283
    %v286 = vadd.f32 %v276, %v283
    %v287 = vadd.f32 %v277, %v283
    %v288 = vadd.f32 %v278, %v283
    %v289 = vadd.f32 %v279, %v283
    %v290 = vadd.f32 %v280, %v283
    %v291 = vmax.f32 %v285, 0.0
    %v292 = vmax.f32 %v286, 0.0
    %v293 = vmax.f32 %v287, 0.0
    %v294 = vmax.f32 %v288, 0.0
    %v295 = vmax.f32 %v289, 0.0
    %v296 = vmax.f32 %v290, 0.0
    %vm297 = vcmp.ge.s32.totalorder %v86, 7
    %vm298 = vcmp.ge.s32.totalorder %v89, 7
    %vm299 = vcmp.ge.s32.totalorder %v92, 7
    %vm300 = vcmp.ge.s32.totalorder %v95, 7
    %vm301 = vcmp.ge.s32.totalorder %v98, 7
    %vm302 = vcmp.ge.s32.totalorder %v101, 7
    %vm303 = vcmp.lt.s32.totalorder %v86, 15
    %vm304 = vcmp.lt.s32.totalorder %v89, 15
    %vm305 = vcmp.lt.s32.totalorder %v92, 15
    %vm306 = vcmp.lt.s32.totalorder %v95, 15
    %vm307 = vcmp.lt.s32.totalorder %v98, 15
    %vm308 = vcmp.lt.s32.totalorder %v101, 15
    %vm309 = vmand %vm297, %vm303
    %vm310 = vmand %vm298, %vm304
    %vm311 = vmand %vm299, %vm305
    %vm312 = vmand %vm300, %vm306
    %vm313 = vmand %vm301, %vm307
    %vm314 = vmand %vm302, %vm308
    %v315 = vsel %vm309, %v291, 0.0
    %v316 = vsel %vm310, %v292, 0.0
    %v317 = vsel %vm311, %v293, 0.0
    %v318 = vsel %vm312, %v294, 0.0
    %v319 = vsel %vm313, %v295, 0.0
    %v320 = vsel %vm314, %v296, 0.0
    %321 = vst [vmem:[#allocation2] sm:$0xff] %v315
    %322 = vst [vmem:[#allocation2 + $0x8] sm:$0xff] %v316
    %323 = vst [vmem:[#allocation2 + $0x10] sm:$0xff] %v317
    %324 = vst [vmem:[#allocation2 + $0x18] sm:$0xff] %v318
    %325 = vst [vmem:[#allocation2 + $0x20] sm:$0xff] %v319
    %326 = vst [vmem:[#allocation2 + $0x28] sm:$0xff] %v320
    %v327 = vld [vmem:[#allocation2] sm:$0xff]
    %v328 = vld [vmem:[#allocation2 + $0x8] sm:$0xff]
    %v329 = vld [vmem:[#allocation2 + $0x10] sm:$0xff]
    %v330 = vld [vmem:[#allocation2 + $0x18] sm:$0xff]
    %v331 = vld [vmem:[#allocation2 + $0x20] sm:$0xff]
    %v332 = vld [vmem:[#allocation2 + $0x28] sm:$0xff]
    %v333 = vld [vmem:[#allocation6] sm:$0xff]
    %v334 = vld [vmem:[#allocation6 + $0x8] sm:$0xff]
    %v335 = vld [vmem:[#allocation6 + $0x10] sm:$0xff]
    %v336 = vld [vmem:[#allocation6 + $0x18] sm:$0xff]
    %v337 = vld [vmem:[#allocation6 + $0x20] sm:$0xff]
    %v338 = vld [vmem:[#allocation6 + $0x28] sm:$0xff]
    %v339 = vld [vmem:[#allocation6 + $0x30] sm:$0xff]
    %v340 = vld [vmem:[#allocation6 + $0x38] sm:$0xff]
    %v341 = vld [vmem:[#allocation6 + $0x40] sm:$0xff]
    %v342 = vld [vmem:[#allocation6 + $0x48] sm:$0xff]
    %v343 = vld [vmem:[#allocation6 + $0x50] sm:$0xff]
    %v344 = vld [vmem:[#allocation6 + $0x58] sm:$0xff]
    %v345 = vld [vmem:[#allocation6 + $0x60] sm:$0xff]
    %v346 = vld [vmem:[#allocation6 + $0x68] sm:$0xff]
    %v347 = vld [vmem:[#allocation6 + $0x70] sm:$0xff]
    %v348 = vld [vmem:[#allocation6 + $0x78] sm:$0xff]
    %v349 = vld [vmem:[#allocation2 + $0x1] sm:$0xff]
    %v350 = vld [vmem:[#allocation2 + $0x9] sm:$0xff]
    %v351 = vld [vmem:[#allocation2 + $0x11] sm:$0xff]
    %v352 = vld [vmem:[#allocation2 + $0x19] sm:$0xff]
    %v353 = vld [vmem:[#allocation2 + $0x21] sm:$0xff]
    %v354 = vld [vmem:[#allocation2 + $0x29] sm:$0xff]
    %s355 = scalar_lea.vmem [#allocation6], 128
    %v356 = vld [vmem:[%s355] sm:$0xff]
    %v357 = vld [vmem:[%s355 + $0x8] sm:$0xff]
    %v358 = vld [vmem:[%s355 + $0x10] sm:$0xff]
    %v359 = vld [vmem:[%s355 + $0x18] sm:$0xff]
    %v360 = vld [vmem:[%s355 + $0x20] sm:$0xff]
    %v361 = vld [vmem:[%s355 + $0x28] sm:$0xff]
    %v362 = vld [vmem:[%s355 + $0x30] sm:$0xff]
    %v363 = vld [vmem:[%s355 + $0x38] sm:$0xff]
    %v364 = vld [vmem:[%s355 + $0x40] sm:$0xff]
    %v365 = vld [vmem:[%s355 + $0x48] sm:$0xff]
    %v366 = vld [vmem:[%s355 + $0x50] sm:$0xff]
    %v367 = vld [vmem:[%s355 + $0x58] sm:$0xff]
    %v368 = vld [vmem:[%s355 + $0x60] sm:$0xff]
    %v369 = vld [vmem:[%s355 + $0x68] sm:$0xff]
    %v370 = vld [vmem:[%s355 + $0x70] sm:$0xff]
    %v371 = vld [vmem:[%s355 + $0x78] sm:$0xff]
    %372 = vmatpush.msra.mxu0 %v371
    %373 = vmatpush.msra.mxu0 %v370
    %374 = vmatpush.msra.mxu0 %v369
    %375 = vmatpush.msra.mxu0 %v368
    %376 = vmatpush.msra.mxu0 %v367
    %377 = vmatpush.msra.mxu0 %v366
    %378 = vmatpush.msra.mxu0 %v365
    %379 = vmatpush.msra.mxu0 %v364
    %380 = vmatpush.msra.mxu0 %v363
    %381 = vmatpush.msra.mxu0 %v362
    %382 = vmatpush.msra.mxu0 %v361
    %383 = vmatpush.msra.mxu0 %v360
    %384 = vmatpush.msra.mxu0 %v359
    %385 = vmatpush.msra.mxu0 %v358
    %386 = vmatpush.msra.mxu0 %v357
    %387 = vmatpush.msra.mxu0 %v356
    %388 = vmatmul.f32.gmra.mxu0 %v349
    %v389 = vpop.f32.mrf.mxu0
    %v390 = vadd.f32 0.0, %v389
    %391 = vmatmul.f32.gmra.mxu0 %v350
    %v392 = vpop.f32.mrf.mxu0
    %v393 = vadd.f32 0.0, %v392
    %394 = vmatmul.f32.gmra.mxu0 %v351
    %v395 = vpop.f32.mrf.mxu0
    %v396 = vadd.f32 0.0, %v395
    %397 = vmatmul.f32.gmra.mxu0 %v352
    %v398 = vpop.f32.mrf.mxu0
    %v399 = vadd.f32 0.0, %v398
    %400 = vmatmul.f32.gmra.mxu0 %v353
    %v401 = vpop.f32.mrf.mxu0
    %v402 = vadd.f32 0.0, %v401
    %403 = vmatmul.f32.gmra.mxu0 %v354
    %v404 = vpop.f32.mrf.mxu0
    %v405 = vadd.f32 0.0, %v404
    %406 = vdwg.mxu0
    %407 = vmatpush.msra.mxu0 %v348
    %408 = vmatpush.msra.mxu0 %v347
    %409 = vmatpush.msra.mxu0 %v346
    %410 = vmatpush.msra.mxu0 %v345
    %411 = vmatpush.msra.mxu0 %v344
    %412 = vmatpush.msra.mxu0 %v343
    %413 = vmatpush.msra.mxu0 %v342
    %414 = vmatpush.msra.mxu0 %v341
    %415 = vmatpush.msra.mxu0 %v340
    %416 = vmatpush.msra.mxu0 %v339
    %417 = vmatpush.msra.mxu0 %v338
    %418 = vmatpush.msra.mxu0 %v337
    %419 = vmatpush.msra.mxu0 %v336
    %420 = vmatpush.msra.mxu0 %v335
    %421 = vmatpush.msra.mxu0 %v334
    %422 = vmatpush.msra.mxu0 %v333
    %423 = vmatmul.f32.gmra.mxu0 %v327
    %v424 = vpop.f32.mrf.mxu0
    %v425 = vadd.f32 %v390, %v424
    %426 = vmatmul.f32.gmra.mxu0 %v328
    %v427 = vpop.f32.mrf.mxu0
    %v428 = vadd.f32 %v393, %v427
    %429 = vmatmul.f32.gmra.mxu0 %v329
    %v430 = vpop.f32.mrf.mxu0
    %v431 = vadd.f32 %v396, %v430
    %432 = vmatmul.f32.gmra.mxu0 %v330
    %v433 = vpop.f32.mrf.mxu0
    %v434 = vadd.f32 %v399, %v433
    %435 = vmatmul.f32.gmra.mxu0 %v331
    %v436 = vpop.f32.mrf.mxu0
    %v437 = vadd.f32 %v402, %v436
    %438 = vmatmul.f32.gmra.mxu0 %v332
    %v439 = vpop.f32.mrf.mxu0
    %v440 = vadd.f32 %v405, %v439
    %441 = vdwg.mxu0
    %v442 = vld [vmem:[#allocation2 + $0x2] sm:$0xff]
    %v443 = vld [vmem:[#allocation2 + $0xa] sm:$0xff]
    %v444 = vld [vmem:[#allocation2 + $0x12] sm:$0xff]
    %v445 = vld [vmem:[#allocation2 + $0x1a] sm:$0xff]
    %v446 = vld [vmem:[#allocation2 + $0x22] sm:$0xff]
    %v447 = vld [vmem:[#allocation2 + $0x2a] sm:$0xff]
    %s448 = scalar_lea.vmem [#allocation6], 256
    %v449 = vld [vmem:[%s448] sm:$0xff]
    %v450 = vld [vmem:[%s448 + $0x8] sm:$0xff]
    %v451 = vld [vmem:[%s448 + $0x10] sm:$0xff]
    %v452 = vld [vmem:[%s448 + $0x18] sm:$0xff]
    %v453 = vld [vmem:[%s448 + $0x20] sm:$0xff]
    %v454 = vld [vmem:[%s448 + $0x28] sm:$0xff]
    %v455 = vld [vmem:[%s448 + $0x30] sm:$0xff]
    %v456 = vld [vmem:[%s448 + $0x38] sm:$0xff]
    %v457 = vld [vmem:[%s448 + $0x40] sm:$0xff]
    %v458 = vld [vmem:[%s448 + $0x48] sm:$0xff]
    %v459 = vld [vmem:[%s448 + $0x50] sm:$0xff]
    %v460 = vld [vmem:[%s448 + $0x58] sm:$0xff]
    %v461 = vld [vmem:[%s448 + $0x60] sm:$0xff]
    %v462 = vld [vmem:[%s448 + $0x68] sm:$0xff]
    %v463 = vld [vmem:[%s448 + $0x70] sm:$0xff]
    %v464 = vld [vmem:[%s448 + $0x78] sm:$0xff]
    %465 = vmatpush.msra.mxu0 %v464
    %466 = vmatpush.msra.mxu0 %v463
    %467 = vmatpush.msra.mxu0 %v462
    %468 = vmatpush.msra.mxu0 %v461
    %469 = vmatpush.msra.mxu0 %v460
    %470 = vmatpush.msra.mxu0 %v459
    %471 = vmatpush.msra.mxu0 %v458
    %472 = vmatpush.msra.mxu0 %v457
    %473 = vmatpush.msra.mxu0 %v456
    %474 = vmatpush.msra.mxu0 %v455
    %475 = vmatpush.msra.mxu0 %v454
    %476 = vmatpush.msra.mxu0 %v453
    %477 = vmatpush.msra.mxu0 %v452
    %478 = vmatpush.msra.mxu0 %v451
    %479 = vmatpush.msra.mxu0 %v450
    %480 = vmatpush.msra.mxu0 %v449
    %481 = vmatmul.f32.gmra.mxu0 %v442
    %v482 = vpop.f32.mrf.mxu0
    %v483 = vadd.f32 0.0, %v482
    %484 = vmatmul.f32.gmra.mxu0 %v443
    %v485 = vpop.f32.mrf.mxu0
    %v486 = vadd.f32 0.0, %v485
    %487 = vmatmul.f32.gmra.mxu0 %v444
    %v488 = vpop.f32.mrf.mxu0
    %v489 = vadd.f32 0.0, %v488
    %490 = vmatmul.f32.gmra.mxu0 %v445
    %v491 = vpop.f32.mrf.mxu0
    %v492 = vadd.f32 0.0, %v491
    %493 = vmatmul.f32.gmra.mxu0 %v446
    %v494 = vpop.f32.mrf.mxu0
    %v495 = vadd.f32 0.0, %v494
    %496 = vmatmul.f32.gmra.mxu0 %v447
    %v497 = vpop.f32.mrf.mxu0
    %v498 = vadd.f32 0.0, %v497
    %499 = vdwg.mxu0
    %v500 = vadd.f32 %v425, %v483
    %v501 = vadd.f32 %v428, %v486
    %v502 = vadd.f32 %v431, %v489
    %v503 = vadd.f32 %v434, %v492
    %v504 = vadd.f32 %v437, %v495
    %v505 = vadd.f32 %v440, %v498
    %v506 = vld [vmem:[%s5] sm:$0x1]
    %v508 = vperm.slane %v506, 0
    %v510 = vadd.f32 %v500, %v508
    %v511 = vadd.f32 %v501, %v508
    %v512 = vadd.f32 %v502, %v508
    %v513 = vadd.f32 %v503, %v508
    %v514 = vadd.f32 %v504, %v508
    %v515 = vadd.f32 %v505, %v508
    %v516 = vmax.f32 %v510, 0.0
    %v517 = vmax.f32 %v511, 0.0
    %v518 = vmax.f32 %v512, 0.0
    %v519 = vmax.f32 %v513, 0.0
    %v520 = vmax.f32 %v514, 0.0
    %v521 = vmax.f32 %v515, 0.0
    %vm522 = vcmp.ge.s32.totalorder %v86, 6
    %vm523 = vcmp.ge.s32.totalorder %v89, 6
    %vm524 = vcmp.ge.s32.totalorder %v92, 6
    %vm525 = vcmp.ge.s32.totalorder %v95, 6
    %vm526 = vcmp.ge.s32.totalorder %v98, 6
    %vm527 = vcmp.ge.s32.totalorder %v101, 6
    %vm528 = vcmp.lt.s32.totalorder %v86, 14
    %vm529 = vcmp.lt.s32.totalorder %v89, 14
    %vm530 = vcmp.lt.s32.totalorder %v92, 14
    %vm531 = vcmp.lt.s32.totalorder %v95, 14
    %vm532 = vcmp.lt.s32.totalorder %v98, 14
    %vm533 = vcmp.lt.s32.totalorder %v101, 14
    %vm534 = vmand %vm522, %vm528
    %vm535 = vmand %vm523, %vm529
    %vm536 = vmand %vm524, %vm530
    %vm537 = vmand %vm525, %vm531
    %vm538 = vmand %vm526, %vm532
    %vm539 = vmand %vm527, %vm533
    %v540 = vsel %vm534, %v516, 0.0
    %v541 = vsel %vm535, %v517, 0.0
    %v542 = vsel %vm536, %v518, 0.0
    %v543 = vsel %vm537, %v519, 0.0
    %v544 = vsel %vm538, %v520, 0.0
    %v545 = vsel %vm539, %v521, 0.0
    %546 = vst [vmem:[#allocation3] sm:$0xff] %v540
    %547 = vst [vmem:[#allocation3 + $0x8] sm:$0xff] %v541
    %548 = vst [vmem:[#allocation3 + $0x10] sm:$0xff] %v542
    %549 = vst [vmem:[#allocation3 + $0x18] sm:$0xff] %v543
    %550 = vst [vmem:[#allocation3 + $0x20] sm:$0xff] %v544
    %551 = vst [vmem:[#allocation3 + $0x28] sm:$0xff] %v545
    %v552 = vld [vmem:[#allocation3] sm:$0xff]
    %v553 = vld [vmem:[#allocation3 + $0x8] sm:$0xff]
    %v554 = vld [vmem:[#allocation3 + $0x10] sm:$0xff]
    %v555 = vld [vmem:[#allocation3 + $0x18] sm:$0xff]
    %v556 = vld [vmem:[#allocation3 + $0x20] sm:$0xff]
    %v557 = vld [vmem:[#allocation3 + $0x28] sm:$0xff]
    %v558 = vld [vmem:[#allocation8] sm:$0xff]
    %v559 = vld [vmem:[#allocation8 + $0x8] sm:$0xff]
    %v560 = vld [vmem:[#allocation8 + $0x10] sm:$0xff]
    %v561 = vld [vmem:[#allocation8 + $0x18] sm:$0xff]
    %v562 = vld [vmem:[#allocation8 + $0x20] sm:$0xff]
    %v563 = vld [vmem:[#allocation8 + $0x28] sm:$0xff]
    %v564 = vld [vmem:[#allocation8 + $0x30] sm:$0xff]
    %v565 = vld [vmem:[#allocation8 + $0x38] sm:$0xff]
    %v566 = vld [vmem:[#allocation8 + $0x40] sm:$0xff]
    %v567 = vld [vmem:[#allocation8 + $0x48] sm:$0xff]
    %v568 = vld [vmem:[#allocation8 + $0x50] sm:$0xff]
    %v569 = vld [vmem:[#allocation8 + $0x58] sm:$0xff]
    %v570 = vld [vmem:[#allocation8 + $0x60] sm:$0xff]
    %v571 = vld [vmem:[#allocation8 + $0x68] sm:$0xff]
    %v572 = vld [vmem:[#allocation8 + $0x70] sm:$0xff]
    %v573 = vld [vmem:[#allocation8 + $0x78] sm:$0xff]
    %v574 = vld [vmem:[#allocation3 + $0x1] sm:$0xff]
    %v575 = vld [vmem:[#allocation3 + $0x9] sm:$0xff]
    %v576 = vld [vmem:[#allocation3 + $0x11] sm:$0xff]
    %v577 = vld [vmem:[#allocation3 + $0x19] sm:$0xff]
    %v578 = vld [vmem:[#allocation3 + $0x21] sm:$0xff]
    %v579 = vld [vmem:[#allocation3 + $0x29] sm:$0xff]
    %s580 = scalar_lea.vmem [#allocation8], 128
    %v581 = vld [vmem:[%s580] sm:$0xff]
    %v582 = vld [vmem:[%s580 + $0x8] sm:$0xff]
    %v583 = vld [vmem:[%s580 + $0x10] sm:$0xff]
    %v584 = vld [vmem:[%s580 + $0x18] sm:$0xff]
    %v585 = vld [vmem:[%s580 + $0x20] sm:$0xff]
    %v586 = vld [vmem:[%s580 + $0x28] sm:$0xff]
    %v587 = vld [vmem:[%s580 + $0x30] sm:$0xff]
    %v588 = vld [vmem:[%s580 + $0x38] sm:$0xff]
    %v589 = vld [vmem:[%s580 + $0x40] sm:$0xff]
    %v590 = vld [vmem:[%s580 + $0x48] sm:$0xff]
    %v591 = vld [vmem:[%s580 + $0x50] sm:$0xff]
    %v592 = vld [vmem:[%s580 + $0x58] sm:$0xff]
    %v593 = vld [vmem:[%s580 + $0x60] sm:$0xff]
    %v594 = vld [vmem:[%s580 + $0x68] sm:$0xff]
    %v595 = vld [vmem:[%s580 + $0x70] sm:$0xff]
    %v596 = vld [vmem:[%s580 + $0x78] sm:$0xff]
    %597 = vmatpush.msra.mxu0 %v596
    %598 = vmatpush.msra.mxu0 %v595
    %599 = vmatpush.msra.mxu0 %v594
    %600 = vmatpush.msra.mxu0 %v593
    %601 = vmatpush.msra.mxu0 %v592
    %602 = vmatpush.msra.mxu0 %v591
    %603 = vmatpush.msra.mxu0 %v590
    %604 = vmatpush.msra.mxu0 %v589
    %605 = vmatpush.msra.mxu0 %v588
    %606 = vmatpush.msra.mxu0 %v587
    %607 = vmatpush.msra.mxu0 %v586
    %608 = vmatpush.msra.mxu0 %v585
    %609 = vmatpush.msra.mxu0 %v584
    %610 = vmatpush.msra.mxu0 %v583
    %611 = vmatpush.msra.mxu0 %v582
    %612 = vmatpush.msra.mxu0 %v581
    %613 = vmatmul.f32.gmra.mxu0 %v574
    %v614 = vpop.f32.mrf.mxu0
    %v615 = vadd.f32 0.0, %v614
    %616 = vmatmul.f32.gmra.mxu0 %v575
    %v617 = vpop.f32.mrf.mxu0
    %v618 = vadd.f32 0.0, %v617
    %619 = vmatmul.f32.gmra.mxu0 %v576
    %v620 = vpop.f32.mrf.mxu0
    %v621 = vadd.f32 0.0, %v620
    %622 = vmatmul.f32.gmra.mxu0 %v577
    %v623 = vpop.f32.mrf.mxu0
    %v624 = vadd.f32 0.0, %v623
    %625 = vmatmul.f32.gmra.mxu0 %v578
    %v626 = vpop.f32.mrf.mxu0
    %v627 = vadd.f32 0.0, %v626
    %628 = vmatmul.f32.gmra.mxu0 %v579
    %v629 = vpop.f32.mrf.mxu0
    %v630 = vadd.f32 0.0, %v629
    %631 = vdwg.mxu0
    %632 = vmatpush.msra.mxu0 %v573
    %633 = vmatpush.msra.mxu0 %v572
    %634 = vmatpush.msra.mxu0 %v571
    %635 = vmatpush.msra.mxu0 %v570
    %636 = vmatpush.msra.mxu0 %v569
    %637 = vmatpush.msra.mxu0 %v568
    %638 = vmatpush.msra.mxu0 %v567
    %639 = vmatpush.msra.mxu0 %v566
    %640 = vmatpush.msra.mxu0 %v565
    %641 = vmatpush.msra.mxu0 %v564
    %642 = vmatpush.msra.mxu0 %v563
    %643 = vmatpush.msra.mxu0 %v562
    %644 = vmatpush.msra.mxu0 %v561
    %645 = vmatpush.msra.mxu0 %v560
    %646 = vmatpush.msra.mxu0 %v559
    %647 = vmatpush.msra.mxu0 %v558
    %648 = vmatmul.f32.gmra.mxu0 %v552
    %v649 = vpop.f32.mrf.mxu0
    %v650 = vadd.f32 %v615, %v649
    %651 = vmatmul.f32.gmra.mxu0 %v553
    %v652 = vpop.f32.mrf.mxu0
    %v653 = vadd.f32 %v618, %v652
    %654 = vmatmul.f32.gmra.mxu0 %v554
    %v655 = vpop.f32.mrf.mxu0
    %v656 = vadd.f32 %v621, %v655
    %657 = vmatmul.f32.gmra.mxu0 %v555
    %v658 = vpop.f32.mrf.mxu0
    %v659 = vadd.f32 %v624, %v658
    %660 = vmatmul.f32.gmra.mxu0 %v556
    %v661 = vpop.f32.mrf.mxu0
    %v662 = vadd.f32 %v627, %v661
    %663 = vmatmul.f32.gmra.mxu0 %v557
    %v664 = vpop.f32.mrf.mxu0
    %v665 = vadd.f32 %v630, %v664
    %666 = vdwg.mxu0
    %v667 = vld [vmem:[#allocation3 + $0x2] sm:$0xff]
    %v668 = vld [vmem:[#allocation3 + $0xa] sm:$0xff]
    %v669 = vld [vmem:[#allocation3 + $0x12] sm:$0xff]
    %v670 = vld [vmem:[#allocation3 + $0x1a] sm:$0xff]
    %v671 = vld [vmem:[#allocation3 + $0x22] sm:$0xff]
    %v672 = vld [vmem:[#allocation3 + $0x2a] sm:$0xff]
    %s673 = scalar_lea.vmem [#allocation8], 256
    %v674 = vld [vmem:[%s673] sm:$0xff]
    %v675 = vld [vmem:[%s673 + $0x8] sm:$0xff]
    %v676 = vld [vmem:[%s673 + $0x10] sm:$0xff]
    %v677 = vld [vmem:[%s673 + $0x18] sm:$0xff]
    %v678 = vld [vmem:[%s673 + $0x20] sm:$0xff]
    %v679 = vld [vmem:[%s673 + $0x28] sm:$0xff]
    %v680 = vld [vmem:[%s673 + $0x30] sm:$0xff]
    %v681 = vld [vmem:[%s673 + $0x38] sm:$0xff]
    %v682 = vld [vmem:[%s673 + $0x40] sm:$0xff]
    %v683 = vld [vmem:[%s673 + $0x48] sm:$0xff]
    %v684 = vld [vmem:[%s673 + $0x50] sm:$0xff]
    %v685 = vld [vmem:[%s673 + $0x58] sm:$0xff]
    %v686 = vld [vmem:[%s673 + $0x60] sm:$0xff]
    %v687 = vld [vmem:[%s673 + $0x68] sm:$0xff]
    %v688 = vld [vmem:[%s673 + $0x70] sm:$0xff]
    %v689 = vld [vmem:[%s673 + $0x78] sm:$0xff]
    %690 = vmatpush.msra.mxu0 %v689
    %691 = vmatpush.msra.mxu0 %v688
    %692 = vmatpush.msra.mxu0 %v687
    %693 = vmatpush.msra.mxu0 %v686
    %694 = vmatpush.msra.mxu0 %v685
    %695 = vmatpush.msra.mxu0 %v684
    %696 = vmatpush.msra.mxu0 %v683
    %697 = vmatpush.msra.mxu0 %v682
    %698 = vmatpush.msra.mxu0 %v681
    %699 = vmatpush.msra.mxu0 %v680
    %700 = vmatpush.msra.mxu0 %v679
    %701 = vmatpush.msra.mxu0 %v678
    %702 = vmatpush.msra.mxu0 %v677
    %703 = vmatpush.msra.mxu0 %v676
    %704 = vmatpush.msra.mxu0 %v675
    %705 = vmatpush.msra.mxu0 %v674
    %706 = vmatmul.f32.gmra.mxu0 %v667
    %v707 = vpop.f32.mrf.mxu0
    %v708 = vadd.f32 0.0, %v707
    %709 = vmatmul.f32.gmra.mxu0 %v668
    %v710 = vpop.f32.mrf.mxu0
    %v711 = vadd.f32 0.0, %v710
    %712 = vmatmul.f32.gmra.mxu0 %v669
    %v713 = vpop.f32.mrf.mxu0
    %v714 = vadd.f32 0.0, %v713
    %715 = vmatmul.f32.gmra.mxu0 %v670
    %v716 = vpop.f32.mrf.mxu0
    %v717 = vadd.f32 0.0, %v716
    %718 = vmatmul.f32.gmra.mxu0 %v671
    %v719 = vpop.f32.mrf.mxu0
    %v720 = vadd.f32 0.0, %v719
    %721 = vmatmul.f32.gmra.mxu0 %v672
    %v722 = vpop.f32.mrf.mxu0
    %v723 = vadd.f32 0.0, %v722
    %724 = vdwg.mxu0
    %v725 = vadd.f32 %v650, %v708
    %v726 = vadd.f32 %v653, %v711
    %v727 = vadd.f32 %v656, %v714
    %v728 = vadd.f32 %v659, %v717
    %v729 = vadd.f32 %v662, %v720
    %v730 = vadd.f32 %v665, %v723
    %v731 = vld [vmem:[%s7] sm:$0x1]
    %v733 = vperm.slane %v731, 0
    %v735 = vadd.f32 %v725, %v733
    %v736 = vadd.f32 %v726, %v733
    %v737 = vadd.f32 %v727, %v733
    %v738 = vadd.f32 %v728, %v733
    %v739 = vadd.f32 %v729, %v733
    %v740 = vadd.f32 %v730, %v733
    %741 = vst [vmem:[%s8] sm:$0xff] %v735
    %742 = vst [vmem:[%s8 + $0x8] sm:$0xff] %v736
    %743 = vst [vmem:[%s8 + $0x10] sm:$0xff] %v737
    %744 = vst [vmem:[%s8 + $0x18] sm:$0xff] %v738
    %745 = vst [vmem:[%s8 + $0x20] sm:$0xff] %v739
    %746 = vst [vmem:[%s8 + $0x28] sm:$0xff] %v740
    // Predicated region
    $region46: #{decoder_forward.1} parent=1 // pred_check
      _
    $region47: #{decoder_forward.1} parent=1 // pred_check_branch
      %748 = sbr.rel (0) target = $region49
    $region48: #{decoder_forward.1} parent=1 // pred_region
      _
    $region49: #{decoder_forward.1} parent=1 // pred_fallthru
      _
    // Predicated region
    $region50: #{decoder_forward.1} parent=1 // pred_check
      _
    $region51: #{decoder_forward.1} parent=1 // pred_check_branch
      %750 = sbr.rel (0) target = $region53
    $region52: #{decoder_forward.1} parent=1 // pred_region
      _
    $region53: #{decoder_forward.1} parent=1 // pred_fallthru
      _
    %751 = vsyncpa [#allocation5], 1
    %752 = vsyncpa [#allocation7], 1

</llo_original>
